<compile_context>
chip_gen: v7x
topology: tpu7x:2x2x1
jax: 0.10.0
libtpu: 0.0.40
codegen_flags: <defaults>
</compile_context>

<pallas_src>
import jax
import jax.numpy as jnp
from jax.experimental import pallas as pl
from jax.experimental.pallas import tpu as pltpu


def make_mlp_kernel(n_layers, use_bf16):
    """Kernel for n_layers Linear layers (ReLU after all but the last).
    All tensors are batch-on-lanes: x_ref (in_dim, tile_b), weights (out, in),
    biases (out, 1), output (out_dim, tile_b)."""

    def kernel(*refs):
        # refs = (xT, wT1, bT1, ..., wTn, bTn, outT)
        x_ref = refs[0]
        out_ref = refs[-1]                      # (out_dim, tile_b), lane-dense

        h = x_ref[...].astype(jnp.float32)      # (in_dim, tile_b)
        for i in range(n_layers):
            wT = refs[1 + 2 * i][...]           # (out_i, in_i)
            bT = refs[2 + 2 * i][...]           # (out_i, 1)
            if use_bf16:
                h = jnp.dot(wT.astype(jnp.bfloat16), h.astype(jnp.bfloat16),
                            preferred_element_type=jnp.float32) + bT
            else:
                h = jnp.dot(wT, h, preferred_element_type=jnp.float32) + bT
            if i < n_layers - 1:
                h = jnp.maximum(h, 0.0)         # VPU elementwise, f32
        out_ref[...] = h.astype(out_ref.dtype)

    return kernel


def _pick_tile(B, max_tile=2048):
    """Return (tile_b, B_pad, steps): tile_b a multiple of 128, steps EVEN and >= 2
    (balanced across v7x's 2 TensorCores), B_pad = steps * tile_b >= B."""
    b128 = -(-B // 128)                 # number of 128-row blocks needed
    max_blocks = max(max_tile // 128, 1)
    steps = -(-b128 // max_blocks)
    if steps % 2 == 1:
        steps += 1
    steps = max(steps, 2)
    tile_blocks = -(-b128 // steps)
    tile_b = tile_blocks * 128
    return tile_b, steps * tile_b, steps


def _prep_stacked_params(params_list):
    """params_list: list (over members) of [(W, b), ...] with W (in, out), b (1, out).
    Returns per-layer stacked, transposed tensors: wT (M, out, in), bT (M, out, 1)."""
    n_layers = len(params_list[0])
    stacked = []
    for l in range(n_layers):
        wT = jnp.stack([p[l][0].T for p in params_list])                 # (M, out, in)
        bT = jnp.stack([p[l][1].reshape(-1, 1) for p in params_list])    # (M, out, 1)
        stacked.append((wT, bT))
    return stacked


def ensemble_mlp_forward(x, params_list, *, use_bf16=False, max_tile=2048):
    """Fused forward for M ensemble members sharing the same input x.
    x: (B, in_dim). Returns (M, B, out_dim)."""
    B, in_dim = x.shape
    M = len(params_list)
    n_layers = len(params_list[0])
    out_dim = params_list[0][-1][0].shape[1]

    tile_b, B_pad, steps = _pick_tile(B, max_tile)

    # Batch on lanes: pad B to a full multiple of tile_b, then transpose once.
    xT = jnp.pad(x, ((0, B_pad - B), (0, 0))).T            # (in_dim, B_pad)

    stacked = _prep_stacked_params(params_list)
    flat = []
    # x streamed over the batch axis; weights indexed by the member grid axis
    # (tiny, stay resident across the inner batch loop).
    in_specs = [pl.BlockSpec((in_dim, tile_b), lambda m, i: (0, i))]
    for wT, bT in stacked:
        flat.extend([wT, bT])
        in_specs.append(pl.BlockSpec((None,) + wT.shape[1:], lambda m, i: (m, 0, 0)))
        in_specs.append(pl.BlockSpec((None,) + bT.shape[1:], lambda m, i: (m, 0, 0)))

    # Lane-dense output blocks: (out_dim, tile_b) with batch on the 128-lane axis.
    out_specs = pl.BlockSpec((None, out_dim, tile_b), lambda m, i: (m, 0, i))

    out_t = pl.pallas_call(
        make_mlp_kernel(n_layers, use_bf16),
        grid=(M, steps),
        in_specs=in_specs,
        out_specs=out_specs,
        out_shape=jax.ShapeDtypeStruct((M, out_dim, B_pad), x.dtype),
        compiler_params=pltpu.CompilerParams(
            dimension_semantics=("parallel", "parallel"),
            # Actual usage is a few MB at tile_b=2048; explicit limit documents the
            # budget and stays inside v5e's smaller scoped-VMEM default.
            vmem_limit_bytes=32 * 1024 * 1024,
        ),
    )(xT, *flat)

    # (M, out_dim, B_pad) -> drop padding rows, back to PyTorch convention.
    return jnp.transpose(out_t[:, :, :B], (0, 2, 1))


def mlp_forward(x, params, *, use_bf16=False, max_tile=2048):
    """Single-MLP forward (PyTorch-convention params: W (in, out), b (1, out))."""
    return ensemble_mlp_forward(x, [params], use_bf16=use_bf16, max_tile=max_tile)[0]


def init_mlp_params(key, input_dim, hidden_sizes):
    """Deterministic init mimicking PyTorch nn.Linear default
    (uniform in [-1/sqrt(fan_in), 1/sqrt(fan_in)]), with output bias[1] = 0.0."""
    params = []
    dims = [input_dim] + list(hidden_sizes)
    for i in range(len(hidden_sizes)):
        fan_in, fan_out = dims[i], dims[i + 1]
        key, kw, kb = jax.random.split(key, 3)
        bound = 1.0 / (fan_in ** 0.5)
        w = jax.random.uniform(kw, (fan_in, fan_out), jnp.float32, -bound, bound)
        b = jax.random.uniform(kb, (1, fan_out), jnp.float32, -bound, bound)
        params.append((w, b))
    fan_in = hidden_sizes[-1]
    key, kw, kb = jax.random.split(key, 3)
    bound = 1.0 / (fan_in ** 0.5)
    w_out = jax.random.uniform(kw, (fan_in, 2), jnp.float32, -bound, bound)
    b_out = jax.random.uniform(kb, (1, 2), jnp.float32, -bound, bound)
    b_out = b_out.at[0, 1].set(0.0)  # output_layer.bias.data[1] = 0.0
    params.append((w_out, b_out))
    return params


def mlp_reference(x, params):
    h = x
    for w, b in params[:-1]:
        h = jnp.maximum(jnp.dot(h, w, precision=jax.lax.Precision.HIGHEST) + b, 0.0)
    w, b = params[-1]
    return jnp.dot(h, w, precision=jax.lax.Precision.HIGHEST) + b


if __name__ == "__main__":
    key = jax.random.PRNGKey(0)
    input_dim = 16
    hidden_sizes = [64, 64]

    key, kp = jax.random.split(key)
    params = init_mlp_params(kp, input_dim, hidden_sizes)

    # B=512 -> tile_b=256, 2 even grid steps; B=300 -> padded to 512, 2 even steps
    # with garbage padding rows sliced off (exercises the padding path).
    for batch in (512, 300):
        key, kx = jax.random.split(key)
        x = jax.random.normal(kx, (batch, input_dim), jnp.float32)

        out = jax.block_until_ready(mlp_forward(x, params))
        ref = mlp_reference(x, params)
        assert out.shape == (batch, 2), out.shape
        assert jnp.allclose(out, ref, atol=1e-4, rtol=1e-4), f"f32 mismatch (B={batch})"

    # Opt-in bf16 feed to the MXU (f32 accumulation): relaxed tolerance.
    key, kx = jax.random.split(key)
    x = jax.random.normal(kx, (512, input_dim), jnp.float32)
    out_bf16 = jax.block_until_ready(mlp_forward(x, params, use_bf16=True))
    ref = mlp_reference(x, params)
    assert jnp.allclose(out_bf16, ref, atol=5e-2, rtol=5e-2), "bf16 mismatch"

    # Fused deep-ensemble: 4 members, one pallas_call (grid = (members, batch tiles)).
    members = []
    for _ in range(4):
        key, kp = jax.random.split(key)
        members.append(init_mlp_params(kp, input_dim, hidden_sizes))
    key, kx = jax.random.split(key)
    xe = jax.random.normal(kx, (300, input_dim), jnp.float32)
    ens = jax.block_until_ready(ensemble_mlp_forward(xe, members))
    assert ens.shape == (4, 300, 2), ens.shape
    for m in range(4):
        refm = mlp_reference(xe, members[m])
        assert jnp.allclose(ens[m], refm, atol=1e-4, rtol=1e-4), f"ensemble mismatch (m={m})"

    print("KERNEL_OK")
</pallas_src>

<mosaic_0001>
module attributes {stable_mosaic.version = 11 : i64} {
  func.func @kernel(%arg0: i32, %arg1: i32, %arg2: memref<16x256xf32, #tpu.memory_space<vmem>>, %arg3: memref<1x64x16xf32, #tpu.memory_space<vmem>>, %arg4: memref<1x64x1xf32, #tpu.memory_space<vmem>>, %arg5: memref<1x64x64xf32, #tpu.memory_space<vmem>>, %arg6: memref<1x64x1xf32, #tpu.memory_space<vmem>>, %arg7: memref<1x2x64xf32, #tpu.memory_space<vmem>>, %arg8: memref<1x2x1xf32, #tpu.memory_space<vmem>>, %arg9: memref<1x2x256xf32, #tpu.memory_space<vmem>>) attributes {dimension_semantics = [#tpu.dimension_semantics<parallel>, #tpu.dimension_semantics<parallel>], iteration_bounds = array<i64: 1, 2>, scalar_prefetch = 0 : i64, scratch_operands = 0 : i64, tpu.core_type = #tpu.core_type<tc>, window_params = [{transform_indices = @transform_0, window_bounds = array<i64: 16, 256>}, {transform_indices = @transform_1, window_bounds = array<i64: 1, 64, 16>}, {transform_indices = @transform_2, window_bounds = array<i64: 1, 64, 1>}, {transform_indices = @transform_3, window_bounds = array<i64: 1, 64, 64>}, {transform_indices = @transform_4, window_bounds = array<i64: 1, 64, 1>}, {transform_indices = @transform_5, window_bounds = array<i64: 1, 2, 64>}, {transform_indices = @transform_6, window_bounds = array<i64: 1, 2, 1>}, {transform_indices = @transform_7, window_bounds = array<i64: 1, 2, 256>}]} {
    %c0 = arith.constant 0 : index
    %c0_0 = arith.constant 0 : index
    %0 = vector.load %arg2[%c0, %c0_0] : memref<16x256xf32, #tpu.memory_space<vmem>>, vector<16x256xf32>
    %c0_1 = arith.constant 0 : index
    %c0_2 = arith.constant 0 : index
    %c0_3 = arith.constant 0 : index
    %1 = vector.load %arg3[%c0_1, %c0_2, %c0_3] : memref<1x64x16xf32, #tpu.memory_space<vmem>>, vector<1x64x16xf32>
    %2 = vector.shape_cast %1 : vector<1x64x16xf32> to vector<64x16xf32>
    %c0_4 = arith.constant 0 : index
    %c0_5 = arith.constant 0 : index
    %c0_6 = arith.constant 0 : index
    %3 = vector.load %arg4[%c0_4, %c0_5, %c0_6] : memref<1x64x1xf32, #tpu.memory_space<vmem>>, vector<1x64x1xf32>
    %4 = vector.shape_cast %3 : vector<1x64x1xf32> to vector<64x1xf32>
    %cst = arith.constant dense<0.000000e+00> : vector<64x256xf32>
    %5 = tpu.matmul %2, %0, %cst {dimension_numbers = #tpu.dot_dimension_numbers<[1], [0], [0], [1], [0, 0, 1, 1], [], []>} : vector<64x16xf32>, vector<16x256xf32>, vector<64x256xf32> -> vector<64x256xf32>
    %6 = vector.broadcast %4 : vector<64x1xf32> to vector<64x256xf32>
    %7 = arith.addf %5, %6 : vector<64x256xf32>
    %cst_7 = arith.constant 0.000000e+00 : f32
    %8 = vector.broadcast %cst_7 : f32 to vector<64x256xf32>
    %9 = arith.maximumf %7, %8 : vector<64x256xf32>
    %c0_8 = arith.constant 0 : index
    %c0_9 = arith.constant 0 : index
    %c0_10 = arith.constant 0 : index
    %10 = vector.load %arg5[%c0_8, %c0_9, %c0_10] : memref<1x64x64xf32, #tpu.memory_space<vmem>>, vector<1x64x64xf32>
    %11 = vector.shape_cast %10 : vector<1x64x64xf32> to vector<64x64xf32>
    %c0_11 = arith.constant 0 : index
    %c0_12 = arith.constant 0 : index
    %c0_13 = arith.constant 0 : index
    %12 = vector.load %arg6[%c0_11, %c0_12, %c0_13] : memref<1x64x1xf32, #tpu.memory_space<vmem>>, vector<1x64x1xf32>
    %13 = vector.shape_cast %12 : vector<1x64x1xf32> to vector<64x1xf32>
    %cst_14 = arith.constant dense<0.000000e+00> : vector<64x256xf32>
    %14 = tpu.matmul %11, %9, %cst_14 {dimension_numbers = #tpu.dot_dimension_numbers<[1], [0], [0], [1], [0, 0, 1, 1], [], []>} : vector<64x64xf32>, vector<64x256xf32>, vector<64x256xf32> -> vector<64x256xf32>
    %15 = vector.broadcast %13 : vector<64x1xf32> to vector<64x256xf32>
    %16 = arith.addf %14, %15 : vector<64x256xf32>
    %cst_15 = arith.constant 0.000000e+00 : f32
    %17 = vector.broadcast %cst_15 : f32 to vector<64x256xf32>
    %18 = arith.maximumf %16, %17 : vector<64x256xf32>
    %c0_16 = arith.constant 0 : index
    %c0_17 = arith.constant 0 : index
    %c0_18 = arith.constant 0 : index
    %19 = vector.load %arg7[%c0_16, %c0_17, %c0_18] : memref<1x2x64xf32, #tpu.memory_space<vmem>>, vector<1x2x64xf32>
    %20 = vector.shape_cast %19 : vector<1x2x64xf32> to vector<2x64xf32>
    %c0_19 = arith.constant 0 : index
    %c0_20 = arith.constant 0 : index
    %c0_21 = arith.constant 0 : index
    %21 = vector.load %arg8[%c0_19, %c0_20, %c0_21] : memref<1x2x1xf32, #tpu.memory_space<vmem>>, vector<1x2x1xf32>
    %22 = vector.shape_cast %21 : vector<1x2x1xf32> to vector<2x1xf32>
    %cst_22 = arith.constant dense<0.000000e+00> : vector<2x256xf32>
    %23 = tpu.matmul %20, %18, %cst_22 {dimension_numbers = #tpu.dot_dimension_numbers<[1], [0], [0], [1], [0, 0, 1, 1], [], []>} : vector<2x64xf32>, vector<64x256xf32>, vector<2x256xf32> -> vector<2x256xf32>
    %24 = vector.broadcast %22 : vector<2x1xf32> to vector<2x256xf32>
    %25 = arith.addf %23, %24 : vector<2x256xf32>
    %c0_23 = arith.constant 0 : index
    %c0_24 = arith.constant 0 : index
    %c0_25 = arith.constant 0 : index
    %26 = vector.load %arg9[%c0_23, %c0_24, %c0_25] : memref<1x2x256xf32, #tpu.memory_space<vmem>>, vector<1x2x256xf32>
    %27 = vector.shape_cast %26 : vector<1x2x256xf32> to vector<2x256xf32>
    %28 = vector.shape_cast %25 : vector<2x256xf32> to vector<1x2x256xf32>
    tpu.vector_store %arg9[%c0_23, %c0_24, %c0_25], %28 {strides = array<i32>} : memref<1x2x256xf32, #tpu.memory_space<vmem>>, vector<1x2x256xf32>,
    return
  }
  func.func @transform_0(%arg0: i32, %arg1: i32) -> (i32, i32) {
    %c0_i32 = arith.constant 0 : i32
    %c0_i32_0 = arith.constant 0 : i32
    return %c0_i32, %arg1 : i32, i32
  }
  func.func @transform_1(%arg0: i32, %arg1: i32) -> (i32, i32, i32) {
    %c0_i32 = arith.constant 0 : i32
    %c0_i32_0 = arith.constant 0 : i32
    %c0_i32_1 = arith.constant 0 : i32
    return %arg0, %c0_i32, %c0_i32_0 : i32, i32, i32
  }
  func.func @transform_2(%arg0: i32, %arg1: i32) -> (i32, i32, i32) {
    %c0_i32 = arith.constant 0 : i32
    %c0_i32_0 = arith.constant 0 : i32
    %c0_i32_1 = arith.constant 0 : i32
    return %arg0, %c0_i32, %c0_i32_0 : i32, i32, i32
  }
  func.func @transform_3(%arg0: i32, %arg1: i32) -> (i32, i32, i32) {
    %c0_i32 = arith.constant 0 : i32
    %c0_i32_0 = arith.constant 0 : i32
    %c0_i32_1 = arith.constant 0 : i32
    return %arg0, %c0_i32, %c0_i32_0 : i32, i32, i32
  }
  func.func @transform_4(%arg0: i32, %arg1: i32) -> (i32, i32, i32) {
    %c0_i32 = arith.constant 0 : i32
    %c0_i32_0 = arith.constant 0 : i32
    %c0_i32_1 = arith.constant 0 : i32
    return %arg0, %c0_i32, %c0_i32_0 : i32, i32, i32
  }
  func.func @transform_5(%arg0: i32, %arg1: i32) -> (i32, i32, i32) {
    %c0_i32 = arith.constant 0 : i32
    %c0_i32_0 = arith.constant 0 : i32
    %c0_i32_1 = arith.constant 0 : i32
    return %arg0, %c0_i32, %c0_i32_0 : i32, i32, i32
  }
  func.func @transform_6(%arg0: i32, %arg1: i32) -> (i32, i32, i32) {
    %c0_i32 = arith.constant 0 : i32
    %c0_i32_0 = arith.constant 0 : i32
    %c0_i32_1 = arith.constant 0 : i32
    return %arg0, %c0_i32, %c0_i32_0 : i32, i32, i32
  }
  func.func @transform_7(%arg0: i32, %arg1: i32) -> (i32, i32, i32) {
    %c0_i32 = arith.constant 0 : i32
    %c0_i32_0 = arith.constant 0 : i32
    return %arg0, %c0_i32, %arg1 : i32, i32, i32
  }
}

</mosaic_0001>

<llo_original>
// kernel: tpu_custom_call.1
$region0: #{tpu_custom_call.1}
  #allocation0 [shape = 'u32[]', space=smem, size = 0x4, offset = 0x4, fixed_abs, tag = 'smem constant byte address 0x4 - core index']
  #allocation1 [shape = 'u32[144,128]{1,0:T(1,128)}', space=vmem, size = 0x12000, scoped, tag = 'internal scratch']
  %s0 = inlined_call_operand.vmem [shape: f32[16,512], index: 0, kind: input, shape index: {}]
  %s1 = inlined_call_operand.vmem [shape: f32[1,64,16], index: 1, kind: input, shape index: {}]
  %s2 = inlined_call_operand.vmem [shape: f32[1,64,1], index: 2, kind: input, shape index: {}]
  %s3 = inlined_call_operand.vmem [shape: f32[1,64,64], index: 3, kind: input, shape index: {}]
  %s4 = inlined_call_operand.vmem [shape: f32[1,64,1], index: 4, kind: input, shape index: {}]
  %s5 = inlined_call_operand.vmem [shape: f32[1,2,64], index: 5, kind: input, shape index: {}]
  %s6 = inlined_call_operand.vmem [shape: f32[1,2,1], index: 6, kind: input, shape index: {}]
  %s7 = inlined_call_operand.hbm [shape: f32[1,2,512], index: 7, kind: output, shape index: {}]
  %s8 = sld [smem:[#allocation0]]
  $region84: #{tpu_custom_call.1} parent=0
    _
  %s10 = ssub.s32 1, %s8
  %s11 = scalar_select 0, %s10, %s8
  $region1: #{tpu_custom_call.1} parent=0
    #allocation2 [shape = 'u8[32768]{0}', space=vmem, size = 0x8000, scoped, tag = 'input window, operand 0']
    #allocation3 [shape = 'u8[4096]{0}', space=vmem, size = 0x1000, scoped, tag = 'output window, operand 0']
    #allocation4 [shape = 's32[2]{0}', space=sflag, size = 0x8, scoped, tag = 'scoped memory for tpu_custom_call.1']
    %12 = vsyncpa [#allocation4], 0
    %s13 = scalar_lea.sflag [#allocation4], 1
    %14 = vsyncpa %s13, 0
    loop: start=0, step=1, limit=4
    $region2: #{tpu_custom_call.1} parent=1 // loop_pre_header
      _
    $region3: #{tpu_custom_call.1} parent=1 // loop_header
      %s16 = sphi 0, %s20
      %p17 = scmp.ge.s32.totalorder %s16, 4
      %s23 = sphi 0, %s35
      %s24 = sphi 0, %s31
      %s25 = sphi 0, %s23
      %s26 = sphi 0, %s24
      %s27 = sphi 0, %s25
      %s28 = sphi 0, %s26
      %s38 = sphi 0, %s40
      %s41 = sphi 0, %s38
      %s42 = sphi 0, %s41
      %s58 = sphi 0, %s42
      %s64 = sphi 0, %s66
      %s67 = sphi 0, %s64
      %s68 = sphi 0, %s67
      %s84 = sphi 0, %s68
      %s90 = sphi 0, %s92
      %s93 = sphi 0, %s90
      %s94 = sphi 0, %s93
      %s110 = sphi 0, %s94
      %s116 = sphi 0, %s118
      %s119 = sphi 0, %s116
      %s120 = sphi 0, %s119
      %s136 = sphi 0, %s120
      %s142 = sphi 0, %s144
      %s145 = sphi 0, %s142
      %s146 = sphi 0, %s145
      %s162 = sphi 0, %s146
      %s168 = sphi 0, %s170
      %s171 = sphi 0, %s168
      %s172 = sphi 0, %s171
      %s188 = sphi 0, %s172
      %s194 = sphi 0, %s196
      %s197 = sphi 0, %s194
      %s198 = sphi 0, %s197
      %s214 = sphi 0, %s198
      %s222 = sphi 0, %s224
      %s225 = sphi 0, %s222
      %s226 = sphi 0, %s225
      %s242 = sphi 0, %s226
    $region4: #{tpu_custom_call.1} parent=1 // loop_header_branch
      %19 = sbr.rel (%p17) target = $region8
    $region5: #{tpu_custom_call.1} parent=1 // loop_body
      %s21 = ssub.s32 %s16, 1
      %s22 = ssub.s32 %s16, 2
      %s29 = sadd.s32 1, %s24
      %p30 = scmp.ge.s32.totalorder %s29, 2
      %s31 = scalar_select %p30, 0, %s29
      %s32 = sadd.s32 1, %s23
      %s33 = scalar_select %p30, %s32, %s23
      %p34 = scmp.ge.s32.totalorder %s33, 1
      %s35 = scalar_select %p34, 0, %s33
      %s36 = ssub.s32 %s24, %s31
      %p37 = scmp.eq.s32.totalorder %s36, 0
      %s39 = sadd.s32 %s38, 1
      %s40 = scalar_select %p37, %s38, %s39
      %p43 = pneg %p37
      %p44 = scmp.eq.s32.totalorder %s16, 1
      %p45 = por %p43, %p44
      %p46 = scmp.ne.s32.totalorder %s38, %s41
      %p47 = scmp.eq.s32.totalorder %s16, 0
      %p48 = por %p46, %p47
      %p49 = scmp.ne.s32.totalorder %s38, %s41
      %p50 = scmp.eq.s32.totalorder %s21, 1
      %p51 = por %p49, %p50
      %p52 = scmp.ne.s32.totalorder %s41, %s42
      %p53 = scmp.eq.s32.totalorder %s21, 0
      %p54 = por %p52, %p53
      %p55 = scmp.ne.s32.totalorder %s41, %s42
      %p56 = scmp.eq.s32.totalorder %s22, 1
      %p57 = por %p55, %p56
      %p59 = scmp.ne.s32.totalorder %s42, %s58
      %p60 = scmp.eq.s32.totalorder %s22, 0
      %p61 = por %p59, %p60
      %s62 = ssub.s32 %s23, %s35
      %p63 = scmp.eq.s32.totalorder %s62, 0
      %s65 = sadd.s32 %s64, 1
      %s66 = scalar_select %p63, %s64, %s65
      %p69 = pneg %p63
      %p70 = scmp.eq.s32.totalorder %s16, 1
      %p71 = por %p69, %p70
      %p72 = scmp.ne.s32.totalorder %s64, %s67
      %p73 = scmp.eq.s32.totalorder %s16, 0
      %p74 = por %p72, %p73
      %p75 = scmp.ne.s32.totalorder %s64, %s67
      %p76 = scmp.eq.s32.totalorder %s21, 1
      %p77 = por %p75, %p76
      %p78 = scmp.ne.s32.totalorder %s67, %s68
      %p79 = scmp.eq.s32.totalorder %s21, 0
      %p80 = por %p78, %p79
      %p81 = scmp.ne.s32.totalorder %s67, %s68
      %p82 = scmp.eq.s32.totalorder %s22, 1
      %p83 = por %p81, %p82
      %p85 = scmp.ne.s32.totalorder %s68, %s84
      %p86 = scmp.eq.s32.totalorder %s22, 0
      %p87 = por %p85, %p86
      %s88 = ssub.s32 %s23, %s35
      %p89 = scmp.eq.s32.totalorder %s88, 0
      %s91 = sadd.s32 %s90, 1
      %s92 = scalar_select %p89, %s90, %s91
      %p95 = pneg %p89
      %p96 = scmp.eq.s32.totalorder %s16, 1
      %p97 = por %p95, %p96
      %p98 = scmp.ne.s32.totalorder %s90, %s93
      %p99 = scmp.eq.s32.totalorder %s16, 0
      %p100 = por %p98, %p99
      %p101 = scmp.ne.s32.totalorder %s90, %s93
      %p102 = scmp.eq.s32.totalorder %s21, 1
      %p103 = por %p101, %p102
      %p104 = scmp.ne.s32.totalorder %s93, %s94
      %p105 = scmp.eq.s32.totalorder %s21, 0
      %p106 = por %p104, %p105
      %p107 = scmp.ne.s32.totalorder %s93, %s94
      %p108 = scmp.eq.s32.totalorder %s22, 1
      %p109 = por %p107, %p108
      %p111 = scmp.ne.s32.totalorder %s94, %s110
      %p112 = scmp.eq.s32.totalorder %s22, 0
      %p113 = por %p111, %p112
      %s114 = ssub.s32 %s23, %s35
      %p115 = scmp.eq.s32.totalorder %s114, 0
      %s117 = sadd.s32 %s116, 1
      %s118 = scalar_select %p115, %s116, %s117
      %p121 = pneg %p115
      %p122 = scmp.eq.s32.totalorder %s16, 1
      %p123 = por %p121, %p122
      %p124 = scmp.ne.s32.totalorder %s116, %s119
      %p125 = scmp.eq.s32.totalorder %s16, 0
      %p126 = por %p124, %p125
      %p127 = scmp.ne.s32.totalorder %s116, %s119
      %p128 = scmp.eq.s32.totalorder %s21, 1
      %p129 = por %p127, %p128
      %p130 = scmp.ne.s32.totalorder %s119, %s120
      %p131 = scmp.eq.s32.totalorder %s21, 0
      %p132 = por %p130, %p131
      %p133 = scmp.ne.s32.totalorder %s119, %s120
      %p134 = scmp.eq.s32.totalorder %s22, 1
      %p135 = por %p133, %p134
      %p137 = scmp.ne.s32.totalorder %s120, %s136
      %p138 = scmp.eq.s32.totalorder %s22, 0
      %p139 = por %p137, %p138
      %s140 = ssub.s32 %s23, %s35
      %p141 = scmp.eq.s32.totalorder %s140, 0
      %s143 = sadd.s32 %s142, 1
      %s144 = scalar_select %p141, %s142, %s143
      %p147 = pneg %p141
      %p148 = scmp.eq.s32.totalorder %s16, 1
      %p149 = por %p147, %p148
      %p150 = scmp.ne.s32.totalorder %s142, %s145
      %p151 = scmp.eq.s32.totalorder %s16, 0
      %p152 = por %p150, %p151
      %p153 = scmp.ne.s32.totalorder %s142, %s145
      %p154 = scmp.eq.s32.totalorder %s21, 1
      %p155 = por %p153, %p154
      %p156 = scmp.ne.s32.totalorder %s145, %s146
      %p157 = scmp.eq.s32.totalorder %s21, 0
      %p158 = por %p156, %p157
      %p159 = scmp.ne.s32.totalorder %s145, %s146
      %p160 = scmp.eq.s32.totalorder %s22, 1
      %p161 = por %p159, %p160
      %p163 = scmp.ne.s32.totalorder %s146, %s162
      %p164 = scmp.eq.s32.totalorder %s22, 0
      %p165 = por %p163, %p164
      %s166 = ssub.s32 %s23, %s35
      %p167 = scmp.eq.s32.totalorder %s166, 0
      %s169 = sadd.s32 %s168, 1
      %s170 = scalar_select %p167, %s168, %s169
      %p173 = pneg %p167
      %p174 = scmp.eq.s32.totalorder %s16, 1
      %p175 = por %p173, %p174
      %p176 = scmp.ne.s32.totalorder %s168, %s171
      %p177 = scmp.eq.s32.totalorder %s16, 0
      %p178 = por %p176, %p177
      %p179 = scmp.ne.s32.totalorder %s168, %s171
      %p180 = scmp.eq.s32.totalorder %s21, 1
      %p181 = por %p179, %p180
      %p182 = scmp.ne.s32.totalorder %s171, %s172
      %p183 = scmp.eq.s32.totalorder %s21, 0
      %p184 = por %p182, %p183
      %p185 = scmp.ne.s32.totalorder %s171, %s172
      %p186 = scmp.eq.s32.totalorder %s22, 1
      %p187 = por %p185, %p186
      %p189 = scmp.ne.s32.totalorder %s172, %s188
      %p190 = scmp.eq.s32.totalorder %s22, 0
      %p191 = por %p189, %p190
      %s192 = ssub.s32 %s23, %s35
      %p193 = scmp.eq.s32.totalorder %s192, 0
      %s195 = sadd.s32 %s194, 1
      %s196 = scalar_select %p193, %s194, %s195
      %p199 = pneg %p193
      %p200 = scmp.eq.s32.totalorder %s16, 1
      %p201 = por %p199, %p200
      %p202 = scmp.ne.s32.totalorder %s194, %s197
      %p203 = scmp.eq.s32.totalorder %s16, 0
      %p204 = por %p202, %p203
      %p205 = scmp.ne.s32.totalorder %s194, %s197
      %p206 = scmp.eq.s32.totalorder %s21, 1
      %p207 = por %p205, %p206
      %p208 = scmp.ne.s32.totalorder %s197, %s198
      %p209 = scmp.eq.s32.totalorder %s21, 0
      %p210 = por %p208, %p209
      %p211 = scmp.ne.s32.totalorder %s197, %s198
      %p212 = scmp.eq.s32.totalorder %s22, 1
      %p213 = por %p211, %p212
      %p215 = scmp.ne.s32.totalorder %s198, %s214
      %p216 = scmp.eq.s32.totalorder %s22, 0
      %p217 = por %p215, %p216
      %s218 = ssub.s32 %s23, %s35
      %s219 = ssub.s32 %s24, %s31
      %s220 = sor.u32 %s218, %s219
      %p221 = scmp.eq.s32.totalorder %s220, 0
      %s223 = sadd.s32 %s222, 1
      %s224 = scalar_select %p221, %s222, %s223
      %p227 = pneg %p221
      %p228 = scmp.eq.s32.totalorder %s16, 1
      %p229 = por %p227, %p228
      %p230 = scmp.ne.s32.totalorder %s222, %s225
      %p231 = scmp.eq.s32.totalorder %s16, 0
      %p232 = por %p230, %p231
      %p233 = scmp.ne.s32.totalorder %s222, %s225
      %p234 = scmp.eq.s32.totalorder %s21, 1
      %p235 = por %p233, %p234
      %p236 = scmp.ne.s32.totalorder %s225, %s226
      %p237 = scmp.eq.s32.totalorder %s21, 0
      %p238 = por %p236, %p237
      %p239 = scmp.ne.s32.totalorder %s225, %s226
      %p240 = scmp.eq.s32.totalorder %s22, 1
      %p241 = por %p239, %p240
      %p243 = scmp.ne.s32.totalorder %s226, %s242
      %p244 = scmp.eq.s32.totalorder %s22, 0
      %p245 = por %p243, %p244
      %p246 = scmp.le.s32.totalorder 1, %s16
      %p247 = scmp.lt.s32.totalorder %s16, 3
      %p248 = pnand %p246, %p247
      %p249 = pneg %p248
      // Predicated region
      $region9: #{tpu_custom_call.1} parent=5 // pred_check
        _
      $region10: #{tpu_custom_call.1} parent=5 // pred_check_branch
        %251 = sbr.rel (%p248) target = $region12
      $region11: #{tpu_custom_call.1} parent=5 // pred_region
        %s252 = ssub.s32 %s16, 1
        // Predicated region
        $region13: #{tpu_custom_call.1} parent=11 // pred_check
          %p253 = pneg %p80
        $region14: #{tpu_custom_call.1} parent=11 // pred_check_branch
          %255 = sbr.rel (%p253) target = $region16
        $region15: #{tpu_custom_call.1} parent=11 // pred_region
          %p256 = scmp.lt.s32.totalorder %s25, 0
          %s257 = scalar_select %p256, %s25, 0
          %s258 = smul.addr %s257, 8
          %s259 = smul.addr %s258, 8
          %s260 = scalar_lea.vmem %s1, %s259
        $region16: #{tpu_custom_call.1} parent=11 // pred_fallthru
          _
        // Predicated region
        $region17: #{tpu_custom_call.1} parent=11 // pred_check
          %p261 = pneg %p106
        $region18: #{tpu_custom_call.1} parent=11 // pred_check_branch
          %263 = sbr.rel (%p261) target = $region20
        $region19: #{tpu_custom_call.1} parent=11 // pred_region
          %p264 = scmp.lt.s32.totalorder %s25, 0
          %s265 = scalar_select %p264, %s25, 0
          %s266 = smul.addr %s265, 8
          %s267 = smul.addr %s266, 8
          %s268 = scalar_lea.vmem %s2, %s267
        $region20: #{tpu_custom_call.1} parent=11 // pred_fallthru
          _
        // Predicated region
        $region21: #{tpu_custom_call.1} parent=11 // pred_check
          %p269 = pneg %p132
        $region22: #{tpu_custom_call.1} parent=11 // pred_check_branch
          %271 = sbr.rel (%p269) target = $region24
        $region23: #{tpu_custom_call.1} parent=11 // pred_region
          %p272 = scmp.lt.s32.totalorder %s25, 0
          %s273 = scalar_select %p272, %s25, 0
          %s274 = smul.addr %s273, 8
          %s275 = smul.addr %s274, 8
          %s276 = scalar_lea.vmem %s3, %s275
        $region24: #{tpu_custom_call.1} parent=11 // pred_fallthru
          _
        // Predicated region
        $region25: #{tpu_custom_call.1} parent=11 // pred_check
          %p277 = pneg %p158
        $region26: #{tpu_custom_call.1} parent=11 // pred_check_branch
          %279 = sbr.rel (%p277) target = $region28
        $region27: #{tpu_custom_call.1} parent=11 // pred_region
          %p280 = scmp.lt.s32.totalorder %s25, 0
          %s281 = scalar_select %p280, %s25, 0
          %s282 = smul.addr %s281, 8
          %s283 = smul.addr %s282, 8
          %s284 = scalar_lea.vmem %s4, %s283
        $region28: #{tpu_custom_call.1} parent=11 // pred_fallthru
          _
        // Predicated region
        $region29: #{tpu_custom_call.1} parent=11 // pred_check
          %p285 = pneg %p184
        $region30: #{tpu_custom_call.1} parent=11 // pred_check_branch
          %287 = sbr.rel (%p285) target = $region32
        $region31: #{tpu_custom_call.1} parent=11 // pred_region
          %p288 = scmp.lt.s32.totalorder %s25, 0
          %s289 = scalar_select %p288, %s25, 0
          %s290 = smul.addr %s289, 2
          %s291 = scalar_lea.vmem %s5, %s290
        $region32: #{tpu_custom_call.1} parent=11 // pred_fallthru
          _
        // Predicated region
        $region33: #{tpu_custom_call.1} parent=11 // pred_check
          %p292 = pneg %p210
        $region34: #{tpu_custom_call.1} parent=11 // pred_check_branch
          %294 = sbr.rel (%p292) target = $region36
        $region35: #{tpu_custom_call.1} parent=11 // pred_region
          %p295 = scmp.lt.s32.totalorder %s25, 0
          %s296 = scalar_select %p295, %s25, 0
          %s297 = smul.addr %s296, 2
          %s298 = scalar_lea.vmem %s6, %s297
        $region36: #{tpu_custom_call.1} parent=11 // pred_fallthru
          _
      $region12: #{tpu_custom_call.1} parent=5 // pred_fallthru
        _
      %p299 = scmp.lt.s32.totalorder %s16, 2
      // Predicated region
      $region37: #{tpu_custom_call.1} parent=5 // pred_check
        %p300 = pneg %p299
      $region38: #{tpu_custom_call.1} parent=5 // pred_check_branch
        %302 = sbr.rel (%p300) target = $region40
      $region39: #{tpu_custom_call.1} parent=5 // pred_region
        // Predicated region
        $region41: #{tpu_custom_call.1} parent=39 // pred_check
          %p303 = pneg %p48
        $region42: #{tpu_custom_call.1} parent=39 // pred_check_branch
          %305 = sbr.rel (%p303) target = $region44
        $region43: #{tpu_custom_call.1} parent=39 // pred_region
          %s306 = sand.u32 %s38, 1
          %s307 = sand.u32 %s38, 1
          %s308 = smul.addr %s307, 32
          %s309 = scalar_lea.vmem [#allocation2], %s308
          %s310 = smul.u32 2, %s24
          %s311 = smul.addr %s310, 8
          %s312 = scalar_lea.vmem %s0, %s311
          // Predicated region
          $region45: #{tpu_custom_call.1} parent=43 // pred_check
            _
          $region46: #{tpu_custom_call.1} parent=43 // pred_check_branch
            %314 = sbr.rel (0) target = $region48
          $region47: #{tpu_custom_call.1} parent=43 // pred_region
            // Predicated region
            $region49: #{tpu_custom_call.1} parent=47 // pred_check
              _
            $region50: #{tpu_custom_call.1} parent=47 // pred_check_branch
              %316 = sbr.rel (0) target = $region52
            $region51: #{tpu_custom_call.1} parent=47 // pred_region
              loop: start=0, step=1, limit=1
              $region53: #{tpu_custom_call.1} parent=51 // loop_pre_header
                _
              $region54: #{tpu_custom_call.1} parent=51 // loop_header
                %s318 = sphi 0, %s322
                %p319 = scmp.ge.s32.totalorder %s318, 1
                %s323 = sphi %s312, %s312
                %s324 = sphi %s309, %s309
              $region55: #{tpu_custom_call.1} parent=51 // loop_header_branch
                %321 = sbr.rel (%p319) target = $region59
              $region56: #{tpu_custom_call.1} parent=51 // loop_body
                %v325 = vld [vmem:[%s323] sm:$0xff]
                %326 = vst [vmem:[%s324] sm:$0xff] %v325
                %v327 = vld [vmem:[%s323 + $0x8] sm:$0xff]
                %328 = vst [vmem:[%s324 + $0x8] sm:$0xff] %v327
                %v329 = vld [vmem:[%s323 + $0x20] sm:$0xff]
                %330 = vst [vmem:[%s324 + $0x10] sm:$0xff] %v329
                %v331 = vld [vmem:[%s323 + $0x28] sm:$0xff]
                %332 = vst [vmem:[%s324 + $0x18] sm:$0xff] %v331
              $region57: #{tpu_custom_call.1} parent=51 // loop_footer
                %s322 = sadd.s32 1, %s318
              $region58: #{tpu_custom_call.1} parent=51 // loop_footer_branch
                %317 = sbr.rel target = $region54
              $region59: #{tpu_custom_call.1} parent=51 // loop_exit
                _
            $region52: #{tpu_custom_call.1} parent=47 // pred_fallthru
              _
            // Predicated region
            $region60: #{tpu_custom_call.1} parent=47 // pred_check
              _
            $region61: #{tpu_custom_call.1} parent=47 // pred_check_branch
              %334 = sbr.rel target = $region63
            $region62: #{tpu_custom_call.1} parent=47 // pred_region
              _
            $region63: #{tpu_custom_call.1} parent=47 // pred_fallthru
              _
          $region48: #{tpu_custom_call.1} parent=43 // pred_fallthru
            _
          %335 = vnop
        $region44: #{tpu_custom_call.1} parent=39 // pred_fallthru
          _
      $region40: #{tpu_custom_call.1} parent=5 // pred_fallthru
        _
      %p336 = scmp.le.s32.totalorder 1, %s16
      %p337 = scmp.lt.s32.totalorder %s16, 3
      %p338 = pnand %p336, %p337
      %p339 = pneg %p338
      // Predicated region
      $region64: #{tpu_custom_call.1} parent=5 // pred_check
        _
      $region65: #{tpu_custom_call.1} parent=5 // pred_check_branch
        %341 = sbr.rel (%p338) target = $region67
      $region66: #{tpu_custom_call.1} parent=5 // pred_region
        %s342 = ssub.s32 %s16, 1
        %s343 = sand.u32 %s41, 1
        %s344 = sand.u32 %s41, 1
        %s345 = smul.addr %s344, 32
        %s346 = scalar_lea.vmem [#allocation2], %s345
        // Predicated region
        $region68: #{tpu_custom_call.1} parent=66 // pred_check
          %p347 = pneg %p54
        $region69: #{tpu_custom_call.1} parent=66 // pred_check_branch
          %349 = sbr.rel (%p347) target = $region71
        $region70: #{tpu_custom_call.1} parent=66 // pred_region
          _
        $region71: #{tpu_custom_call.1} parent=66 // pred_fallthru
          _
        %s350 = sand.u32 %s41, 1
        %s351 = sand.u32 %s41, 1
        %s352 = smul.addr %s351, 32
        %s353 = scalar_lea.vmem [#allocation2], %s352
        %p354 = pneg %p54
        %p355 = pneg %p51
        %p356 = scmp.lt.s32.totalorder %s25, 0
        %s357 = scalar_select %p356, %s25, 0
        %s358 = smul.addr %s357, 8
        %s359 = smul.addr %s358, 8
        %s360 = scalar_lea.vmem %s1, %s359
        %p361 = pneg %p80
        %p362 = pneg %p77
        %p363 = scmp.lt.s32.totalorder %s25, 0
        %s364 = scalar_select %p363, %s25, 0
        %s365 = smul.addr %s364, 8
        %s366 = smul.addr %s365, 8
        %s367 = scalar_lea.vmem %s2, %s366
        %p368 = pneg %p106
        %p369 = pneg %p103
        %p370 = scmp.lt.s32.totalorder %s25, 0
        %s371 = scalar_select %p370, %s25, 0
        %s372 = smul.addr %s371, 8
        %s373 = smul.addr %s372, 8
        %s374 = scalar_lea.vmem %s3, %s373
        %p375 = pneg %p132
        %p376 = pneg %p129
        %p377 = scmp.lt.s32.totalorder %s25, 0
        %s378 = scalar_select %p377, %s25, 0
        %s379 = smul.addr %s378, 8
        %s380 = smul.addr %s379, 8
        %s381 = scalar_lea.vmem %s4, %s380
        %p382 = pneg %p158
        %p383 = pneg %p155
        %p384 = scmp.lt.s32.totalorder %s25, 0
        %s385 = scalar_select %p384, %s25, 0
        %s386 = smul.addr %s385, 2
        %s387 = scalar_lea.vmem %s5, %s386
        %p388 = pneg %p184
        %p389 = pneg %p181
        %p390 = scmp.lt.s32.totalorder %s25, 0
        %s391 = scalar_select %p390, %s25, 0
        %s392 = smul.addr %s391, 2
        %s393 = scalar_lea.vmem %s6, %s392
        %p394 = pneg %p210
        %p395 = pneg %p207
        %p396 = pneg %p238
        %p397 = pneg %p235
        %s398 = sand.u32 %s225, 1
        %s399 = scalar_lea.sflag [#allocation4], %s398
        %s400 = sand.u32 %s225, 1
        %s401 = smul.addr %s400, 4
        %s402 = scalar_lea.vmem [#allocation3], %s401
        %s403 = smul.u32 2, %s26
        %p404 = scmp.lt.s32.totalorder %s25, 0
        %s405 = scalar_select %p404, %s25, 0
        %s406 = smul.addr %s405, 8
        %s407 = smul.addr %s406, 8
        %s408 = scalar_lea.vmem %s1, %s407
        %p409 = scmp.lt.s32.totalorder %s25, 0
        %s410 = scalar_select %p409, %s25, 0
        %s411 = smul.addr %s410, 8
        %s412 = smul.addr %s411, 8
        %s413 = scalar_lea.vmem %s2, %s412
        %p414 = scmp.lt.s32.totalorder %s25, 0
        %s415 = scalar_select %p414, %s25, 0
        %s416 = smul.addr %s415, 8
        %s417 = smul.addr %s416, 8
        %s418 = scalar_lea.vmem %s3, %s417
        %p419 = scmp.lt.s32.totalorder %s25, 0
        %s420 = scalar_select %p419, %s25, 0
        %s421 = smul.addr %s420, 8
        %s422 = smul.addr %s421, 8
        %s423 = scalar_lea.vmem %s4, %s422
        %p424 = scmp.lt.s32.totalorder %s25, 0
        %s425 = scalar_select %p424, %s25, 0
        %s426 = smul.addr %s425, 2
        %s427 = scalar_lea.vmem %s5, %s426
        %p428 = scmp.lt.s32.totalorder %s25, 0
        %s429 = scalar_select %p428, %s25, 0
        %s430 = smul.addr %s429, 2
        %s431 = scalar_lea.vmem %s6, %s430
        %s432 = smul.u32 2, %s26
        %v433 = vld [vmem:[%s346] sm:$0xff]
        %v434 = vld [vmem:[%s346 + $0x8] sm:$0xff]
        %v435 = vld [vmem:[%s346 + $0x10] sm:$0xff]
        %v436 = vld [vmem:[%s346 + $0x18] sm:$0xff]
        %v437 = vld [vmem:[%s408] sm:$0xff]
        %v438 = vld [vmem:[%s408 + $0x8] sm:$0xff]
        %v439 = vld [vmem:[%s408 + $0x10] sm:$0xff]
        %v440 = vld [vmem:[%s408 + $0x18] sm:$0xff]
        %v441 = vld [vmem:[%s408 + $0x20] sm:$0xff]
        %v442 = vld [vmem:[%s408 + $0x28] sm:$0xff]
        %v443 = vld [vmem:[%s408 + $0x30] sm:$0xff]
        %v444 = vld [vmem:[%s408 + $0x38] sm:$0xff]
        %v445 = vld [vmem:[%s413] sm:$0xff]
        %v446 = vld [vmem:[%s413 + $0x8] sm:$0xff]
        %v447 = vld [vmem:[%s413 + $0x10] sm:$0xff]
        %v448 = vld [vmem:[%s413 + $0x18] sm:$0xff]
        %v449 = vld [vmem:[%s413 + $0x20] sm:$0xff]
        %v450 = vld [vmem:[%s413 + $0x28] sm:$0xff]
        %v451 = vld [vmem:[%s413 + $0x30] sm:$0xff]
        %v452 = vld [vmem:[%s413 + $0x38] sm:$0xff]
        %454 = vset.pattern.permute.xlu0 0
        %455 = vperm.xlu0 %454, %v445
        %v456 = vpop.permute.xlu0 %455
        %459 = vset.pattern.permute.xlu0 0
        %460 = vperm.xlu0 %459, %v446
        %v461 = vpop.permute.xlu0 %460
        %464 = vset.pattern.permute.xlu0 0
        %465 = vperm.xlu0 %464, %v447
        %v466 = vpop.permute.xlu0 %465
        %469 = vset.pattern.permute.xlu0 0
        %470 = vperm.xlu0 %469, %v448
        %v471 = vpop.permute.xlu0 %470
        %474 = vset.pattern.permute.xlu0 0
        %475 = vperm.xlu0 %474, %v449
        %v476 = vpop.permute.xlu0 %475
        %479 = vset.pattern.permute.xlu0 0
        %480 = vperm.xlu0 %479, %v450
        %v481 = vpop.permute.xlu0 %480
        %484 = vset.pattern.permute.xlu0 0
        %485 = vperm.xlu0 %484, %v451
        %v486 = vpop.permute.xlu0 %485
        %489 = vset.pattern.permute.xlu0 0
        %490 = vperm.xlu0 %489, %v452
        %v491 = vpop.permute.xlu0 %490
        %vm493 = vcmask 130048
        %v495 = vsel %vm493, %v437, 0
        %v498 = vsel %vm493, %v438, 0
        %v501 = vsel %vm493, %v439, 0
        %v504 = vsel %vm493, %v440, 0
        %v507 = vsel %vm493, %v441, 0
        %v510 = vsel %vm493, %v442, 0
        %v513 = vsel %vm493, %v443, 0
        %v516 = vsel %vm493, %v444, 0
        %518 = vmatprep.subr.mxu0 %v434
        %519 = vmatpush1.msra.mxu0 %v433
        %520 = vmatprep.subr.mxu0 %v436
        %521 = vmatpush1.msra.mxu0 %v435
        %522 = vmatprep.subr.mxu0 0.0
        %523 = vmatpush1.msra.mxu0 0.0
        %524 = vmatprep.subr.mxu0 0.0
        %525 = vmatpush1.msra.mxu0 0.0
        %526 = vmatprep.subr.mxu0 0.0
        %527 = vmatpush1.msra.mxu0 0.0
        %528 = vmatprep.subr.mxu0 0.0
        %529 = vmatpush1.msra.mxu0 0.0
        %530 = vmatprep.subr.mxu0 0.0
        %531 = vmatpush1.msra.mxu0 0.0
        %532 = vmatprep.subr.mxu0 0.0
        %533 = vmatpush1.msra.mxu0 0.0
        %534 = vmatprep.subr.mxu0 0.0
        %535 = vmatpush1.msra.mxu0 0.0
        %536 = vmatprep.subr.mxu0 0.0
        %537 = vmatpush1.msra.mxu0 0.0
        %538 = vmatprep.subr.mxu0 0.0
        %539 = vmatpush1.msra.mxu0 0.0
        %540 = vmatprep.subr.mxu0 0.0
        %541 = vmatpush1.msra.mxu0 0.0
        %542 = vmatprep.subr.mxu0 0.0
        %543 = vmatpush1.msra.mxu0 0.0
        %544 = vmatprep.subr.mxu0 0.0
        %545 = vmatpush1.msra.mxu0 0.0
        %546 = vmatprep.subr.mxu0 0.0
        %547 = vmatpush1.msra.mxu0 0.0
        %548 = vmatprep.subr.mxu0 0.0
        %549 = vmatpush1.msra.mxu0 0.0
        %550 = vmatprep.subr.mxu0 0.0
        %551 = vmatpush1.msra.mxu0 0.0
        %552 = vmatprep.subr.mxu0 0.0
        %553 = vmatpush1.msra.mxu0 0.0
        %554 = vmatprep.subr.mxu0 0.0
        %555 = vmatpush1.msra.mxu0 0.0
        %556 = vmatprep.subr.mxu0 0.0
        %557 = vmatpush1.msra.mxu0 0.0
        %558 = vmatprep.subr.mxu0 0.0
        %559 = vmatpush1.msra.mxu0 0.0
        %560 = vmatprep.subr.mxu0 0.0
        %561 = vmatpush1.msra.mxu0 0.0
        %562 = vmatprep.subr.mxu0 0.0
        %563 = vmatpush1.msra.mxu0 0.0
        %564 = vmatprep.subr.mxu0 0.0
        %565 = vmatpush1.msra.mxu0 0.0
        %566 = vmatprep.subr.mxu0 0.0
        %567 = vmatpush1.msra.mxu0 0.0
        %568 = vmatprep.subr.mxu0 0.0
        %569 = vmatpush1.msra.mxu0 0.0
        %570 = vmatprep.subr.mxu0 0.0
        %571 = vmatpush1.msra.mxu0 0.0
        %572 = vmatprep.subr.mxu0 0.0
        %573 = vmatpush1.msra.mxu0 0.0
        %574 = vmatprep.subr.mxu0 0.0
        %575 = vmatpush1.msra.mxu0 0.0
        %576 = vmatprep.subr.mxu0 0.0
        %577 = vmatpush1.msra.mxu0 0.0
        %578 = vmatprep.subr.mxu0 0.0
        %579 = vmatpush1.msra.mxu0 0.0
        %580 = vmatprep.subr.mxu0 0.0
        %581 = vmatpush1.msra.mxu0 0.0
        %582 = vmatprep.mubr.f32.mxu0 0.0
        %583 = vmatmul.mubr.f32.gmra.mrb[0].mxu0 %v495
        %v584 = vpop.f32.mrb[0].mxu0
        %v585 = vadd.f32 %v456, %v584
        %v586 = vpop.f32.mrb[0].mxu0
        %v587 = vadd.f32 %v456, %v586
        %588 = vmatprep.mubr.f32.mxu0 0.0
        %589 = vmatmul.mubr.f32.gmra.mrb[0].mxu0 %v498
        %v590 = vpop.f32.mrb[0].mxu0
        %v591 = vadd.f32 %v461, %v590
        %v592 = vpop.f32.mrb[0].mxu0
        %v593 = vadd.f32 %v461, %v592
        %594 = vmatprep.mubr.f32.mxu0 0.0
        %595 = vmatmul.mubr.f32.gmra.mrb[0].mxu0 %v501
        %v596 = vpop.f32.mrb[0].mxu0
        %v597 = vadd.f32 %v466, %v596
        %v598 = vpop.f32.mrb[0].mxu0
        %v599 = vadd.f32 %v466, %v598
        %600 = vmatprep.mubr.f32.mxu0 0.0
        %601 = vmatmul.mubr.f32.gmra.mrb[0].mxu0 %v504
        %v602 = vpop.f32.mrb[0].mxu0
        %v603 = vadd.f32 %v471, %v602
        %v604 = vpop.f32.mrb[0].mxu0
        %v605 = vadd.f32 %v471, %v604
        %606 = vmatprep.mubr.f32.mxu0 0.0
        %607 = vmatmul.mubr.f32.gmra.mrb[0].mxu0 %v507
        %v608 = vpop.f32.mrb[0].mxu0
        %v609 = vadd.f32 %v476, %v608
        %v610 = vpop.f32.mrb[0].mxu0
        %v611 = vadd.f32 %v476, %v610
        %612 = vmatprep.mubr.f32.mxu0 0.0
        %613 = vmatmul.mubr.f32.gmra.mrb[0].mxu0 %v510
        %v614 = vpop.f32.mrb[0].mxu0
        %v615 = vadd.f32 %v481, %v614
        %v616 = vpop.f32.mrb[0].mxu0
        %v617 = vadd.f32 %v481, %v616
        %618 = vmatprep.mubr.f32.mxu0 0.0
        %619 = vmatmul.mubr.f32.gmra.mrb[0].mxu0 %v513
        %v620 = vpop.f32.mrb[0].mxu0
        %v621 = vadd.f32 %v486, %v620
        %v622 = vpop.f32.mrb[0].mxu0
        %v623 = vadd.f32 %v486, %v622
        %624 = vmatprep.mubr.f32.mxu0 0.0
        %625 = vmatmul.mubr.f32.gmra.mrb[0].mxu0 %v516
        %v626 = vpop.f32.mrb[0].mxu0
        %v627 = vadd.f32 %v491, %v626
        %v628 = vpop.f32.mrb[0].mxu0
        %v629 = vadd.f32 %v491, %v628
        %630 = vdwg.mxu0
        %v631 = vmax.f32 %v585, 0.0
        %v632 = vmax.f32 %v587, 0.0
        %v633 = vmax.f32 %v591, 0.0
        %v634 = vmax.f32 %v593, 0.0
        %v635 = vmax.f32 %v597, 0.0
        %v636 = vmax.f32 %v599, 0.0
        %v637 = vmax.f32 %v603, 0.0
        %v638 = vmax.f32 %v605, 0.0
        %v639 = vmax.f32 %v609, 0.0
        %v640 = vmax.f32 %v611, 0.0
        %v641 = vmax.f32 %v615, 0.0
        %v642 = vmax.f32 %v617, 0.0
        %v643 = vmax.f32 %v621, 0.0
        %v644 = vmax.f32 %v623, 0.0
        %v645 = vmax.f32 %v627, 0.0
        %v646 = vmax.f32 %v629, 0.0
        %v647 = vld [vmem:[%s418] sm:$0xff]
        %v648 = vld [vmem:[%s418 + $0x8] sm:$0xff]
        %v649 = vld [vmem:[%s418 + $0x10] sm:$0xff]
        %v650 = vld [vmem:[%s418 + $0x18] sm:$0xff]
        %v651 = vld [vmem:[%s418 + $0x20] sm:$0xff]
        %v652 = vld [vmem:[%s418 + $0x28] sm:$0xff]
        %v653 = vld [vmem:[%s418 + $0x30] sm:$0xff]
        %v654 = vld [vmem:[%s418 + $0x38] sm:$0xff]
        %v655 = vld [vmem:[%s423] sm:$0xff]
        %v656 = vld [vmem:[%s423 + $0x8] sm:$0xff]
        %v657 = vld [vmem:[%s423 + $0x10] sm:$0xff]
        %v658 = vld [vmem:[%s423 + $0x18] sm:$0xff]
        %v659 = vld [vmem:[%s423 + $0x20] sm:$0xff]
        %v660 = vld [vmem:[%s423 + $0x28] sm:$0xff]
        %v661 = vld [vmem:[%s423 + $0x30] sm:$0xff]
        %v662 = vld [vmem:[%s423 + $0x38] sm:$0xff]
        %664 = vset.pattern.permute.xlu0 0
        %665 = vperm.xlu0 %664, %v655
        %v666 = vpop.permute.xlu0 %665
        %669 = vset.pattern.permute.xlu0 0
        %670 = vperm.xlu0 %669, %v656
        %v671 = vpop.permute.xlu0 %670
        %674 = vset.pattern.permute.xlu0 0
        %675 = vperm.xlu0 %674, %v657
        %v676 = vpop.permute.xlu0 %675
        %679 = vset.pattern.permute.xlu0 0
        %680 = vperm.xlu0 %679, %v658
        %v681 = vpop.permute.xlu0 %680
        %684 = vset.pattern.permute.xlu0 0
        %685 = vperm.xlu0 %684, %v659
        %v686 = vpop.permute.xlu0 %685
        %689 = vset.pattern.permute.xlu0 0
        %690 = vperm.xlu0 %689, %v660
        %v691 = vpop.permute.xlu0 %690
        %694 = vset.pattern.permute.xlu0 0
        %695 = vperm.xlu0 %694, %v661
        %v696 = vpop.permute.xlu0 %695
        %699 = vset.pattern.permute.xlu0 0
        %700 = vperm.xlu0 %699, %v662
        %v701 = vpop.permute.xlu0 %700
        %vm703 = vcmask 523264
        %v705 = vsel %vm703, %v647, 0
        %v708 = vsel %vm703, %v648, 0
        %v711 = vsel %vm703, %v649, 0
        %v714 = vsel %vm703, %v650, 0
        %v717 = vsel %vm703, %v651, 0
        %v720 = vsel %vm703, %v652, 0
        %v723 = vsel %vm703, %v653, 0
        %v726 = vsel %vm703, %v654, 0
        %728 = vmatprep.subr.mxu0 %v632
        %729 = vmatpush1.msra.mxu0 %v631
        %730 = vmatprep.subr.mxu0 %v634
        %731 = vmatpush1.msra.mxu0 %v633
        %732 = vmatprep.subr.mxu0 %v636
        %733 = vmatpush1.msra.mxu0 %v635
        %734 = vmatprep.subr.mxu0 %v638
        %735 = vmatpush1.msra.mxu0 %v637
        %736 = vmatprep.subr.mxu0 %v640
        %737 = vmatpush1.msra.mxu0 %v639
        %738 = vmatprep.subr.mxu0 %v642
        %739 = vmatpush1.msra.mxu0 %v641
        %740 = vmatprep.subr.mxu0 %v644
        %741 = vmatpush1.msra.mxu0 %v643
        %742 = vmatprep.subr.mxu0 %v646
        %743 = vmatpush1.msra.mxu0 %v645
        %744 = vmatprep.subr.mxu0 0.0
        %745 = vmatpush1.msra.mxu0 0.0
        %746 = vmatprep.subr.mxu0 0.0
        %747 = vmatpush1.msra.mxu0 0.0
        %748 = vmatprep.subr.mxu0 0.0
        %749 = vmatpush1.msra.mxu0 0.0
        %750 = vmatprep.subr.mxu0 0.0
        %751 = vmatpush1.msra.mxu0 0.0
        %752 = vmatprep.subr.mxu0 0.0
        %753 = vmatpush1.msra.mxu0 0.0
        %754 = vmatprep.subr.mxu0 0.0
        %755 = vmatpush1.msra.mxu0 0.0
        %756 = vmatprep.subr.mxu0 0.0
        %757 = vmatpush1.msra.mxu0 0.0
        %758 = vmatprep.subr.mxu0 0.0
        %759 = vmatpush1.msra.mxu0 0.0
        %760 = vmatprep.subr.mxu0 0.0
        %761 = vmatpush1.msra.mxu0 0.0
        %762 = vmatprep.subr.mxu0 0.0
        %763 = vmatpush1.msra.mxu0 0.0
        %764 = vmatprep.subr.mxu0 0.0
        %765 = vmatpush1.msra.mxu0 0.0
        %766 = vmatprep.subr.mxu0 0.0
        %767 = vmatpush1.msra.mxu0 0.0
        %768 = vmatprep.subr.mxu0 0.0
        %769 = vmatpush1.msra.mxu0 0.0
        %770 = vmatprep.subr.mxu0 0.0
        %771 = vmatpush1.msra.mxu0 0.0
        %772 = vmatprep.subr.mxu0 0.0
        %773 = vmatpush1.msra.mxu0 0.0
        %774 = vmatprep.subr.mxu0 0.0
        %775 = vmatpush1.msra.mxu0 0.0
        %776 = vmatprep.subr.mxu0 0.0
        %777 = vmatpush1.msra.mxu0 0.0
        %778 = vmatprep.subr.mxu0 0.0
        %779 = vmatpush1.msra.mxu0 0.0
        %780 = vmatprep.subr.mxu0 0.0
        %781 = vmatpush1.msra.mxu0 0.0
        %782 = vmatprep.subr.mxu0 0.0
        %783 = vmatpush1.msra.mxu0 0.0
        %784 = vmatprep.subr.mxu0 0.0
        %785 = vmatpush1.msra.mxu0 0.0
        %786 = vmatprep.subr.mxu0 0.0
        %787 = vmatpush1.msra.mxu0 0.0
        %788 = vmatprep.subr.mxu0 0.0
        %789 = vmatpush1.msra.mxu0 0.0
        %790 = vmatprep.subr.mxu0 0.0
        %791 = vmatpush1.msra.mxu0 0.0
        %792 = vmatprep.mubr.f32.mxu0 0.0
        %793 = vmatmul.mubr.f32.gmra.mrb[0].mxu0 %v705
        %v794 = vpop.f32.mrb[0].mxu0
        %v795 = vadd.f32 %v666, %v794
        %v796 = vpop.f32.mrb[0].mxu0
        %v797 = vadd.f32 %v666, %v796
        %798 = vmatprep.mubr.f32.mxu0 0.0
        %799 = vmatmul.mubr.f32.gmra.mrb[0].mxu0 %v708
        %v800 = vpop.f32.mrb[0].mxu0
        %v801 = vadd.f32 %v671, %v800
        %v802 = vpop.f32.mrb[0].mxu0
        %v803 = vadd.f32 %v671, %v802
        %804 = vmatprep.mubr.f32.mxu0 0.0
        %805 = vmatmul.mubr.f32.gmra.mrb[0].mxu0 %v711
        %v806 = vpop.f32.mrb[0].mxu0
        %v807 = vadd.f32 %v676, %v806
        %v808 = vpop.f32.mrb[0].mxu0
        %v809 = vadd.f32 %v676, %v808
        %810 = vmatprep.mubr.f32.mxu0 0.0
        %811 = vmatmul.mubr.f32.gmra.mrb[0].mxu0 %v714
        %v812 = vpop.f32.mrb[0].mxu0
        %v813 = vadd.f32 %v681, %v812
        %v814 = vpop.f32.mrb[0].mxu0
        %v815 = vadd.f32 %v681, %v814
        %816 = vmatprep.mubr.f32.mxu0 0.0
        %817 = vmatmul.mubr.f32.gmra.mrb[0].mxu0 %v717
        %v818 = vpop.f32.mrb[0].mxu0
        %v819 = vadd.f32 %v686, %v818
        %v820 = vpop.f32.mrb[0].mxu0
        %v821 = vadd.f32 %v686, %v820
        %822 = vmatprep.mubr.f32.mxu0 0.0
        %823 = vmatmul.mubr.f32.gmra.mrb[0].mxu0 %v720
        %v824 = vpop.f32.mrb[0].mxu0
        %v825 = vadd.f32 %v691, %v824
        %v826 = vpop.f32.mrb[0].mxu0
        %v827 = vadd.f32 %v691, %v826
        %828 = vmatprep.mubr.f32.mxu0 0.0
        %829 = vmatmul.mubr.f32.gmra.mrb[0].mxu0 %v723
        %v830 = vpop.f32.mrb[0].mxu0
        %v831 = vadd.f32 %v696, %v830
        %v832 = vpop.f32.mrb[0].mxu0
        %v833 = vadd.f32 %v696, %v832
        %834 = vmatprep.mubr.f32.mxu0 0.0
        %835 = vmatmul.mubr.f32.gmra.mrb[0].mxu0 %v726
        %v836 = vpop.f32.mrb[0].mxu0
        %v837 = vadd.f32 %v701, %v836
        %v838 = vpop.f32.mrb[0].mxu0
        %v839 = vadd.f32 %v701, %v838
        %840 = vdwg.mxu0
        %v841 = vmax.f32 %v795, 0.0
        %v842 = vmax.f32 %v797, 0.0
        %v843 = vmax.f32 %v801, 0.0
        %v844 = vmax.f32 %v803, 0.0
        %v845 = vmax.f32 %v807, 0.0
        %v846 = vmax.f32 %v809, 0.0
        %v847 = vmax.f32 %v813, 0.0
        %v848 = vmax.f32 %v815, 0.0
        %v849 = vmax.f32 %v819, 0.0
        %v850 = vmax.f32 %v821, 0.0
        %v851 = vmax.f32 %v825, 0.0
        %v852 = vmax.f32 %v827, 0.0
        %v853 = vmax.f32 %v831, 0.0
        %v854 = vmax.f32 %v833, 0.0
        %v855 = vmax.f32 %v837, 0.0
        %v856 = vmax.f32 %v839, 0.0
        %v857 = vld [vmem:[%s427] sm:$0x3]
        %v858 = vld [vmem:[%s431] sm:$0x3]
        %860 = vset.pattern.permute.xlu0 0
        %861 = vperm.xlu0 %860, %v858
        %v862 = vpop.permute.xlu0 %861
        %v865 = vsel %vm703, %v857, 0
        %867 = vmatprep.subr.mxu0 %v842
        %868 = vmatpush1.msra.mxu0 %v841
        %869 = vmatprep.subr.mxu0 %v844
        %870 = vmatpush1.msra.mxu0 %v843
        %871 = vmatprep.subr.mxu0 %v846
        %872 = vmatpush1.msra.mxu0 %v845
        %873 = vmatprep.subr.mxu0 %v848
        %874 = vmatpush1.msra.mxu0 %v847
        %875 = vmatprep.subr.mxu0 %v850
        %876 = vmatpush1.msra.mxu0 %v849
        %877 = vmatprep.subr.mxu0 %v852
        %878 = vmatpush1.msra.mxu0 %v851
        %879 = vmatprep.subr.mxu0 %v854
        %880 = vmatpush1.msra.mxu0 %v853
        %881 = vmatprep.subr.mxu0 %v856
        %882 = vmatpush1.msra.mxu0 %v855
        %883 = vmatprep.subr.mxu0 0.0
        %884 = vmatpush1.msra.mxu0 0.0
        %885 = vmatprep.subr.mxu0 0.0
        %886 = vmatpush1.msra.mxu0 0.0
        %887 = vmatprep.subr.mxu0 0.0
        %888 = vmatpush1.msra.mxu0 0.0
        %889 = vmatprep.subr.mxu0 0.0
        %890 = vmatpush1.msra.mxu0 0.0
        %891 = vmatprep.subr.mxu0 0.0
        %892 = vmatpush1.msra.mxu0 0.0
        %893 = vmatprep.subr.mxu0 0.0
        %894 = vmatpush1.msra.mxu0 0.0
        %895 = vmatprep.subr.mxu0 0.0
        %896 = vmatpush1.msra.mxu0 0.0
        %897 = vmatprep.subr.mxu0 0.0
        %898 = vmatpush1.msra.mxu0 0.0
        %899 = vmatprep.subr.mxu0 0.0
        %900 = vmatpush1.msra.mxu0 0.0
        %901 = vmatprep.subr.mxu0 0.0
        %902 = vmatpush1.msra.mxu0 0.0
        %903 = vmatprep.subr.mxu0 0.0
        %904 = vmatpush1.msra.mxu0 0.0
        %905 = vmatprep.subr.mxu0 0.0
        %906 = vmatpush1.msra.mxu0 0.0
        %907 = vmatprep.subr.mxu0 0.0
        %908 = vmatpush1.msra.mxu0 0.0
        %909 = vmatprep.subr.mxu0 0.0
        %910 = vmatpush1.msra.mxu0 0.0
        %911 = vmatprep.subr.mxu0 0.0
        %912 = vmatpush1.msra.mxu0 0.0
        %913 = vmatprep.subr.mxu0 0.0
        %914 = vmatpush1.msra.mxu0 0.0
        %915 = vmatprep.subr.mxu0 0.0
        %916 = vmatpush1.msra.mxu0 0.0
        %917 = vmatprep.subr.mxu0 0.0
        %918 = vmatpush1.msra.mxu0 0.0
        %919 = vmatprep.subr.mxu0 0.0
        %920 = vmatpush1.msra.mxu0 0.0
        %921 = vmatprep.subr.mxu0 0.0
        %922 = vmatpush1.msra.mxu0 0.0
        %923 = vmatprep.subr.mxu0 0.0
        %924 = vmatpush1.msra.mxu0 0.0
        %925 = vmatprep.subr.mxu0 0.0
        %926 = vmatpush1.msra.mxu0 0.0
        %927 = vmatprep.subr.mxu0 0.0
        %928 = vmatpush1.msra.mxu0 0.0
        %929 = vmatprep.subr.mxu0 0.0
        %930 = vmatpush1.msra.mxu0 0.0
        %931 = vmatprep.mubr.f32.mxu0 0.0
        %932 = vmatmul.mubr.f32.gmra.mrb[0].mxu0 %v865
        %v933 = vpop.f32.mrb[0].mxu0
        %v934 = vadd.f32 %v862, %v933
        %v935 = vpop.f32.mrb[0].mxu0
        %v936 = vadd.f32 %v862, %v935
        %937 = vdwg.mxu0
        %v940 = vcombine.low %v934, %v936
        %v942 = vunpack.c.l.s4 1983009808
        %v943 = vunpack.c.0.s8 %v942
        %v944 = vlaneseq
        %v945 = vshrl.u32 %v944, 7
        %v946 = vsub.s32 %v943, %v945
        %v947 = vrot.slane %v940, %v946
        %949 = vst [vmem:[%s402] sm:$0xf] %v947
        %s950 = sand.u32 %s225, 1
        %s951 = scalar_lea.sflag [#allocation4], %s950
        %s952 = sand.u32 %s225, 1
        %s953 = smul.addr %s952, 4
        %s954 = scalar_lea.vmem [#allocation3], %s953
        // Predicated region
        $region72: #{tpu_custom_call.1} parent=66 // pred_check
          %p955 = pneg %p235
        $region73: #{tpu_custom_call.1} parent=66 // pred_check_branch
          %957 = sbr.rel (%p955) target = $region75
        $region74: #{tpu_custom_call.1} parent=66 // pred_region
          %s958 = smul.u32 2, %s26
          %s960 = ssub.s32 64, 64
          %961 = vsyncadd %s951, %s960
          %s962 = smul.addr %s25, 4
          %s963 = sadd.s32 %s958, %s962
          %s964 = smul.addr %s963, 32
          %s965 = scalar_lea.hbm %s7, %s964
          %s967 = sshll.u32 %s954, 4
          %s968 = int_to_ptr.vmem [resolvable:$true] %s967
          %970 = dma.vmem_to_hbm [thread:$0]  %s968, 64, %s965, %s951
        $region75: #{tpu_custom_call.1} parent=66 // pred_fallthru
          _
      $region67: #{tpu_custom_call.1} parent=5 // pred_fallthru
        _
      %p971 = scmp.le.s32.totalorder 2, %s16
      // Predicated region
      $region76: #{tpu_custom_call.1} parent=5 // pred_check
        %p972 = pneg %p971
      $region77: #{tpu_custom_call.1} parent=5 // pred_check_branch
        %974 = sbr.rel (%p972) target = $region79
      $region78: #{tpu_custom_call.1} parent=5 // pred_region
        %s975 = ssub.s32 %s16, 2
        // Predicated region
        $region80: #{tpu_custom_call.1} parent=78 // pred_check
          %p976 = pneg %p241
        $region81: #{tpu_custom_call.1} parent=78 // pred_check_branch
          %978 = sbr.rel (%p976) target = $region83
        $region82: #{tpu_custom_call.1} parent=78 // pred_region
          %s979 = sand.u32 %s226, 1
          %s980 = scalar_lea.sflag [#allocation4], %s979
          %s981 = sand.u32 %s226, 1
          %s982 = smul.addr %s981, 4
          %s983 = scalar_lea.vmem [#allocation3], %s982
          %984 = dma.done %s980, 64
        $region83: #{tpu_custom_call.1} parent=78 // pred_fallthru
          _
      $region79: #{tpu_custom_call.1} parent=5 // pred_fallthru
        _
    $region6: #{tpu_custom_call.1} parent=1 // loop_footer
      %s20 = sadd.s32 1, %s16
    $region7: #{tpu_custom_call.1} parent=1 // loop_footer_branch
      %15 = sbr.rel target = $region3
    $region8: #{tpu_custom_call.1} parent=1 // loop_exit
      _
    %985 = vsyncpa [#allocation4], 1
    %s986 = scalar_lea.sflag [#allocation4], 1
    %987 = vsyncpa %s986, 1

</llo_original>
